<compile_context>
chip_gen: v6e
topology: v6e:2x2x1
jax: 0.10.0
libtpu: 0.0.40
codegen_flags: <defaults>
</compile_context>

<pallas_src>
import functools

import jax
import jax.numpy as jnp
from jax.experimental import pallas as pl
from jax.experimental.pallas import tpu as pltpu


def _rotary_kernel(x_ref, cos_ref, sin_a_ref, sin_b_ref, o_ref, *, half: int):
    # x_ref / o_ref:                     (t_tile, H*D)  in the input dtype
    # cos_ref / sin_a_ref / sin_b_ref:   (t_tile, H*D)  f32
    x = x_ref[...].astype(jnp.float32)
    hd = x.shape[-1]
    # Partner elements via cheap XLU lane rotations (jnp.roll semantics):
    #   roll(x, hd - half) == roll(x, -half): first-half lanes see their x2
    #   roll(x, half):                        second-half lanes see their x1
    x_m = pltpu.roll(x, shift=hd - half, axis=1)
    x_p = pltpu.roll(x, shift=half, axis=1)
    y = x * cos_ref[...] + x_m * sin_a_ref[...] + x_p * sin_b_ref[...]
    o_ref[...] = y.astype(o_ref.dtype)


def make_rotary_tables(dim: int, max_seq_len: int):
    """Deterministic buffer construction matching the PyTorch __init__."""
    angular_freq = (1.0 / 1024.0) ** jnp.linspace(
        0.0, 1.0, num=dim // 4, dtype=jnp.float32)
    angular_freq = jnp.concatenate(
        [angular_freq, jnp.zeros((dim // 4,), dtype=jnp.float32)])
    t = jnp.arange(max_seq_len, dtype=jnp.float32)
    theta = jnp.einsum("i,j->ij", t, angular_freq)  # (max_seq_len, dim//2)
    return jnp.cos(theta), jnp.sin(theta)


def _choose_t_tile(B: int, T: int, HD: int, x_itemsize: int,
                   vmem_budget_bytes: int) -> int:
    """Largest multiple-of-8 divisor of T whose double-buffered blocks fit."""
    # Per sequence row of a block (double-buffered): input + output in x dtype,
    # plus 3 f32 table rows.
    bytes_per_row = 2 * (2 * x_itemsize + 3 * 4) * HD
    cap = max(8, int(vmem_budget_bytes // max(bytes_per_row, 1)))
    if B == 1 and T >= 16:
        cap = min(cap, T // 2)  # keep >=2 grid steps so both v7x TCs stream
    best = 8
    t = 8
    limit = min(cap, T)
    while t <= limit:
        if T % t == 0:
            best = t
        t += 8
    return best


def rotary_forward(x, cos_full, sin_full, *, t_tile: int | None = None,
                   vmem_budget_bytes: int = 40 * 1024 * 1024):
    """x: (B, T, H, D); cos_full/sin_full: (max_seq_len, D//2)."""
    B, T, H, D = x.shape
    assert D % 2 == 0
    assert cos_full.shape[0] >= T and cos_full.shape[1] == D // 2
    assert T % 8 == 0, "sequence length must be a multiple of 8 for TPU tiling"
    HD = H * D
    D2 = D // 2

    # ---- plain-JAX glue: lane-dense, per-head-duplicated tables (T, H*D) ----
    cos = cos_full[:T].astype(jnp.float32)
    sin = sin_full[:T].astype(jnp.float32)
    zeros = jnp.zeros_like(sin)
    cos_cat = jnp.tile(jnp.concatenate([cos, cos], axis=-1), (1, H))    # (T, HD)
    sin_a = jnp.tile(jnp.concatenate([sin, zeros], axis=-1), (1, H))    # (T, HD)
    sin_b = jnp.tile(jnp.concatenate([zeros, -sin], axis=-1), (1, H))   # (T, HD)

    x2d = x.reshape(B * T, HD)  # free reshape -> lane-dense last dim

    if t_tile is None:
        t_tile = _choose_t_tile(B, T, HD, x.dtype.itemsize, vmem_budget_bytes)
    assert T % t_tile == 0 and t_tile % 8 == 0
    n_t = T // t_tile

    # grid = (t-tiles, batch); batch is innermost so the table block index is
    # constant across the inner loop and its DMA is issued once per t-tile.
    grid = (n_t, B)
    x_spec = pl.BlockSpec((t_tile, HD), lambda tb, b: (b * n_t + tb, 0))
    tab_spec = pl.BlockSpec((t_tile, HD), lambda tb, b: (tb, 0))

    out2d = pl.pallas_call(
        functools.partial(_rotary_kernel, half=D2),
        out_shape=jax.ShapeDtypeStruct((B * T, HD), x.dtype),
        grid_spec=pltpu.PrefetchScalarGridSpec(
            num_scalar_prefetch=0,
            grid=grid,
            in_specs=[x_spec, tab_spec, tab_spec, tab_spec],
            out_specs=x_spec,
        ),
        compiler_params=pltpu.CompilerParams(
            dimension_semantics=("parallel", "parallel"),
            vmem_limit_bytes=48 * 1024 * 1024,  # > v5e default, < v7x physical
        ),
        # Note: input_output_aliases={0: 0} is possible if the caller donates x.
    )(x2d, cos_cat, sin_a, sin_b)
    return out2d.reshape(B, T, H, D)


def rotary_reference(x, cos_full, sin_full):
    B, T, H, D = x.shape
    cos = cos_full[None, :T, None, :]
    sin = sin_full[None, :T, None, :]
    xf = x.astype(jnp.float32)
    x1, x2 = xf[..., : D // 2], xf[..., D // 2:]
    y1 = x1 * cos + x2 * sin
    y2 = -x1 * sin + x2 * cos
    return jnp.concatenate([y1, y2], axis=-1).astype(x.dtype)


if __name__ == "__main__":
    B, T, H, D = 2, 16, 4, 32          # small shapes consistent with x_BTHD
    max_seq_len = 32

    key = jax.random.PRNGKey(0)
    x = jax.random.normal(key, (B, T, H, D), dtype=jnp.float32).astype(jnp.bfloat16)

    cos_full, sin_full = make_rotary_tables(D, max_seq_len)

    out = rotary_forward(x, cos_full, sin_full)
    out = jax.block_until_ready(out)

    ref = rotary_reference(x, cos_full, sin_full)
    assert out.shape == (B, T, H, D) and out.dtype == x.dtype
    assert jnp.allclose(out.astype(jnp.float32), ref.astype(jnp.float32),
                        atol=1e-2, rtol=1e-2)
    print("KERNEL_OK")
</pallas_src>

<mosaic_0001>
module attributes {stable_mosaic.version = 11 : i64} {
  func.func @_rotary_kernel(%arg0: i32, %arg1: i32, %arg2: memref<16x128xbf16, #tpu.memory_space<vmem>>, %arg3: memref<16x128xf32, #tpu.memory_space<vmem>>, %arg4: memref<16x128xf32, #tpu.memory_space<vmem>>, %arg5: memref<16x128xf32, #tpu.memory_space<vmem>>, %arg6: memref<16x128xbf16, #tpu.memory_space<vmem>>) attributes {dimension_semantics = [#tpu.dimension_semantics<parallel>, #tpu.dimension_semantics<parallel>], iteration_bounds = array<i64: 1, 2>, scalar_prefetch = 0 : i64, scratch_operands = 0 : i64, tpu.core_type = #tpu.core_type<tc>, window_params = [{transform_indices = @transform_0, window_bounds = array<i64: 16, 128>}, {transform_indices = @transform_1, window_bounds = array<i64: 16, 128>}, {transform_indices = @transform_2, window_bounds = array<i64: 16, 128>}, {transform_indices = @transform_3, window_bounds = array<i64: 16, 128>}, {transform_indices = @transform_4, window_bounds = array<i64: 16, 128>}]} {
    %c0 = arith.constant 0 : index
    %c0_0 = arith.constant 0 : index
    %0 = vector.load %arg2[%c0, %c0_0] : memref<16x128xbf16, #tpu.memory_space<vmem>>, vector<16x128xbf16>
    %1 = arith.extf %0 : vector<16x128xbf16> to vector<16x128xf32>
    %c112_i32 = arith.constant 112 : i32
    %2 = tpu.dynamic_rotate %1 by %c112_i32 dim 1 : vector<16x128xf32>, i32 -> vector<16x128xf32>
    %c16_i32 = arith.constant 16 : i32
    %3 = tpu.dynamic_rotate %1 by %c16_i32 dim 1 : vector<16x128xf32>, i32 -> vector<16x128xf32>
    %c0_1 = arith.constant 0 : index
    %c0_2 = arith.constant 0 : index
    %4 = vector.load %arg3[%c0_1, %c0_2] : memref<16x128xf32, #tpu.memory_space<vmem>>, vector<16x128xf32>
    %5 = arith.mulf %1, %4 : vector<16x128xf32>
    %c0_3 = arith.constant 0 : index
    %c0_4 = arith.constant 0 : index
    %6 = vector.load %arg4[%c0_3, %c0_4] : memref<16x128xf32, #tpu.memory_space<vmem>>, vector<16x128xf32>
    %7 = arith.mulf %2, %6 : vector<16x128xf32>
    %8 = arith.addf %5, %7 : vector<16x128xf32>
    %c0_5 = arith.constant 0 : index
    %c0_6 = arith.constant 0 : index
    %9 = vector.load %arg5[%c0_5, %c0_6] : memref<16x128xf32, #tpu.memory_space<vmem>>, vector<16x128xf32>
    %10 = arith.mulf %3, %9 : vector<16x128xf32>
    %11 = arith.addf %8, %10 : vector<16x128xf32>
    %12 = arith.truncf %11 : vector<16x128xf32> to vector<16x128xbf16>
    %c0_7 = arith.constant 0 : index
    %c0_8 = arith.constant 0 : index
    %13 = vector.load %arg6[%c0_7, %c0_8] : memref<16x128xbf16, #tpu.memory_space<vmem>>, vector<16x128xbf16>
    tpu.vector_store %arg6[%c0_7, %c0_8], %12 {strides = array<i32>} : memref<16x128xbf16, #tpu.memory_space<vmem>>, vector<16x128xbf16>,
    return
  }
  func.func @transform_0(%arg0: i32, %arg1: i32) -> (i32, i32) {
    %c1_i32 = arith.constant 1 : i32
    %0 = arith.muli %arg1, %c1_i32 : i32
    %1 = arith.addi %0, %arg0 : i32
    %c0_i32 = arith.constant 0 : i32
    %c0_i32_0 = arith.constant 0 : i32
    return %1, %c0_i32 : i32, i32
  }
  func.func @transform_1(%arg0: i32, %arg1: i32) -> (i32, i32) {
    %c0_i32 = arith.constant 0 : i32
    %c0_i32_0 = arith.constant 0 : i32
    return %arg0, %c0_i32 : i32, i32
  }
  func.func @transform_2(%arg0: i32, %arg1: i32) -> (i32, i32) {
    %c0_i32 = arith.constant 0 : i32
    %c0_i32_0 = arith.constant 0 : i32
    return %arg0, %c0_i32 : i32, i32
  }
  func.func @transform_3(%arg0: i32, %arg1: i32) -> (i32, i32) {
    %c0_i32 = arith.constant 0 : i32
    %c0_i32_0 = arith.constant 0 : i32
    return %arg0, %c0_i32 : i32, i32
  }
  func.func @transform_4(%arg0: i32, %arg1: i32) -> (i32, i32) {
    %c1_i32 = arith.constant 1 : i32
    %0 = arith.muli %arg1, %c1_i32 : i32
    %1 = arith.addi %0, %arg0 : i32
    %c0_i32 = arith.constant 0 : i32
    %c0_i32_0 = arith.constant 0 : i32
    return %1, %c0_i32 : i32, i32
  }
}

</mosaic_0001>

<llo_original>
// kernel: tpu_custom_call.1
$region0: #{tpu_custom_call.1}
  #allocation0 [shape = 'u32[]', space=smem, size = 0x4, offset = 0x4, fixed_abs, tag = 'smem constant byte address 0x4 - core index']
  #allocation1 [shape = 'u32[144,128]{1,0:T(1,128)}', space=vmem, size = 0x12000, scoped, tag = 'internal scratch']
  %s0 = inlined_call_operand.hbm [shape: bf16[32,128], index: 0, kind: input, shape index: {}]
  %s1 = inlined_call_operand.hbm [shape: f32[16,128], index: 1, kind: input, shape index: {}]
  %s2 = inlined_call_operand.hbm [shape: f32[16,128], index: 2, kind: input, shape index: {}]
  %s3 = inlined_call_operand.hbm [shape: f32[16,128], index: 3, kind: input, shape index: {}]
  %s4 = inlined_call_operand.hbm [shape: bf16[32,128], index: 4, kind: output, shape index: {}]
  %s5 = sld [smem:[#allocation0]]
  $region65: #{tpu_custom_call.1} parent=0
    _
  %s7 = ssub.s32 1, %s5
  %s8 = scalar_select 0, %s7, %s5
  $region1: #{tpu_custom_call.1} parent=0
    #allocation2 [shape = 'u8[8192]{0}', space=vmem, size = 0x2000, scoped, tag = 'input window, operand 0']
    #allocation3 [shape = 's32[2]{0}', space=sflag, size = 0x8, scoped, tag = 'scoped memory for tpu_custom_call.1']
    #allocation4 [shape = 's32[2]{0}', space=sflag, size = 0x8, scoped, tag = 'scoped memory for tpu_custom_call.1']
    #allocation5 [shape = 'u8[8192]{0}', space=vmem, size = 0x2000, scoped, tag = 'input window, operand 1, single buffered']
    #allocation6 [shape = 's32[1]{0}', space=sflag, size = 0x4, scoped, tag = 'scoped memory for tpu_custom_call.1']
    #allocation7 [shape = 'u8[8192]{0}', space=vmem, size = 0x2000, scoped, tag = 'input window, operand 2, single buffered']
    #allocation8 [shape = 'u8[8192]{0}', space=vmem, size = 0x2000, scoped, tag = 'input window, operand 3, single buffered']
    #allocation9 [shape = 's32[1]{0}', space=sflag, size = 0x4, scoped, tag = 'scoped memory for tpu_custom_call.1']
    #allocation10 [shape = 'u8[8192]{0}', space=vmem, size = 0x2000, scoped, tag = 'output window, operand 0']
    %9 = vsyncpa [#allocation3], 0
    %s10 = scalar_lea.sflag [#allocation3], 1
    %11 = vsyncpa %s10, 0
    %12 = vsyncpa [#allocation6], 0
    %13 = vsyncpa [#allocation9], 0
    %14 = vsyncpa [#allocation4], 0
    %s15 = scalar_lea.sflag [#allocation4], 1
    %16 = vsyncpa %s15, 0
    loop: start=0, step=1, limit=4
    $region2: #{tpu_custom_call.1} parent=1 // loop_pre_header
      _
    $region3: #{tpu_custom_call.1} parent=1 // loop_header
      %s18 = sphi 0, %s22
      %p19 = scmp.ge.s32.totalorder %s18, 4
      %s25 = sphi 0, %s37
      %s26 = sphi 0, %s33
      %s27 = sphi 0, %s25
      %s28 = sphi 0, %s26
      %s29 = sphi 0, %s27
      %s30 = sphi 0, %s28
      %s42 = sphi 0, %s44
      %s45 = sphi 0, %s42
      %s46 = sphi 0, %s45
      %s62 = sphi 0, %s46
      %s68 = sphi 0, %s70
      %s71 = sphi 0, %s68
      %s72 = sphi 0, %s71
      %s88 = sphi 0, %s72
      %s94 = sphi 0, %s96
      %s97 = sphi 0, %s94
      %s98 = sphi 0, %s97
      %s114 = sphi 0, %s98
      %s120 = sphi 0, %s122
      %s123 = sphi 0, %s120
      %s124 = sphi 0, %s123
      %s140 = sphi 0, %s124
      %s148 = sphi 0, %s150
      %s151 = sphi 0, %s148
      %s152 = sphi 0, %s151
      %s168 = sphi 0, %s152
    $region4: #{tpu_custom_call.1} parent=1 // loop_header_branch
      %21 = sbr.rel (%p19) target = $region8
    $region5: #{tpu_custom_call.1} parent=1 // loop_body
      %s23 = ssub.s32 %s18, 1
      %s24 = ssub.s32 %s18, 2
      %s31 = sadd.s32 1, %s26
      %p32 = scmp.ge.s32.totalorder %s31, 2
      %s33 = scalar_select %p32, 0, %s31
      %s34 = sadd.s32 1, %s25
      %s35 = scalar_select %p32, %s34, %s25
      %p36 = scmp.ge.s32.totalorder %s35, 1
      %s37 = scalar_select %p36, 0, %s35
      %s38 = sadd.s32 %s26, %s25
      %s39 = sadd.s32 %s33, %s37
      %s40 = ssub.s32 %s38, %s39
      %p41 = scmp.eq.s32.totalorder %s40, 0
      %s43 = sadd.s32 %s42, 1
      %s44 = scalar_select %p41, %s42, %s43
      %p47 = pneg %p41
      %p48 = scmp.eq.s32.totalorder %s18, 1
      %p49 = por %p47, %p48
      %p50 = scmp.ne.s32.totalorder %s42, %s45
      %p51 = scmp.eq.s32.totalorder %s18, 0
      %p52 = por %p50, %p51
      %p53 = scmp.ne.s32.totalorder %s42, %s45
      %p54 = scmp.eq.s32.totalorder %s23, 1
      %p55 = por %p53, %p54
      %p56 = scmp.ne.s32.totalorder %s45, %s46
      %p57 = scmp.eq.s32.totalorder %s23, 0
      %p58 = por %p56, %p57
      %p59 = scmp.ne.s32.totalorder %s45, %s46
      %p60 = scmp.eq.s32.totalorder %s24, 1
      %p61 = por %p59, %p60
      %p63 = scmp.ne.s32.totalorder %s46, %s62
      %p64 = scmp.eq.s32.totalorder %s24, 0
      %p65 = por %p63, %p64
      %s66 = ssub.s32 %s25, %s37
      %p67 = scmp.eq.s32.totalorder %s66, 0
      %s69 = sadd.s32 %s68, 1
      %s70 = scalar_select %p67, %s68, %s69
      %p73 = pneg %p67
      %p74 = scmp.eq.s32.totalorder %s18, 1
      %p75 = por %p73, %p74
      %p76 = scmp.ne.s32.totalorder %s68, %s71
      %p77 = scmp.eq.s32.totalorder %s18, 0
      %p78 = por %p76, %p77
      %p79 = scmp.ne.s32.totalorder %s68, %s71
      %p80 = scmp.eq.s32.totalorder %s23, 1
      %p81 = por %p79, %p80
      %p82 = scmp.ne.s32.totalorder %s71, %s72
      %p83 = scmp.eq.s32.totalorder %s23, 0
      %p84 = por %p82, %p83
      %p85 = scmp.ne.s32.totalorder %s71, %s72
      %p86 = scmp.eq.s32.totalorder %s24, 1
      %p87 = por %p85, %p86
      %p89 = scmp.ne.s32.totalorder %s72, %s88
      %p90 = scmp.eq.s32.totalorder %s24, 0
      %p91 = por %p89, %p90
      %s92 = ssub.s32 %s25, %s37
      %p93 = scmp.eq.s32.totalorder %s92, 0
      %s95 = sadd.s32 %s94, 1
      %s96 = scalar_select %p93, %s94, %s95
      %p99 = pneg %p93
      %p100 = scmp.eq.s32.totalorder %s18, 1
      %p101 = por %p99, %p100
      %p102 = scmp.ne.s32.totalorder %s94, %s97
      %p103 = scmp.eq.s32.totalorder %s18, 0
      %p104 = por %p102, %p103
      %p105 = scmp.ne.s32.totalorder %s94, %s97
      %p106 = scmp.eq.s32.totalorder %s23, 1
      %p107 = por %p105, %p106
      %p108 = scmp.ne.s32.totalorder %s97, %s98
      %p109 = scmp.eq.s32.totalorder %s23, 0
      %p110 = por %p108, %p109
      %p111 = scmp.ne.s32.totalorder %s97, %s98
      %p112 = scmp.eq.s32.totalorder %s24, 1
      %p113 = por %p111, %p112
      %p115 = scmp.ne.s32.totalorder %s98, %s114
      %p116 = scmp.eq.s32.totalorder %s24, 0
      %p117 = por %p115, %p116
      %s118 = ssub.s32 %s25, %s37
      %p119 = scmp.eq.s32.totalorder %s118, 0
      %s121 = sadd.s32 %s120, 1
      %s122 = scalar_select %p119, %s120, %s121
      %p125 = pneg %p119
      %p126 = scmp.eq.s32.totalorder %s18, 1
      %p127 = por %p125, %p126
      %p128 = scmp.ne.s32.totalorder %s120, %s123
      %p129 = scmp.eq.s32.totalorder %s18, 0
      %p130 = por %p128, %p129
      %p131 = scmp.ne.s32.totalorder %s120, %s123
      %p132 = scmp.eq.s32.totalorder %s23, 1
      %p133 = por %p131, %p132
      %p134 = scmp.ne.s32.totalorder %s123, %s124
      %p135 = scmp.eq.s32.totalorder %s23, 0
      %p136 = por %p134, %p135
      %p137 = scmp.ne.s32.totalorder %s123, %s124
      %p138 = scmp.eq.s32.totalorder %s24, 1
      %p139 = por %p137, %p138
      %p141 = scmp.ne.s32.totalorder %s124, %s140
      %p142 = scmp.eq.s32.totalorder %s24, 0
      %p143 = por %p141, %p142
      %s144 = sadd.s32 %s26, %s25
      %s145 = sadd.s32 %s33, %s37
      %s146 = ssub.s32 %s144, %s145
      %p147 = scmp.eq.s32.totalorder %s146, 0
      %s149 = sadd.s32 %s148, 1
      %s150 = scalar_select %p147, %s148, %s149
      %p153 = pneg %p147
      %p154 = scmp.eq.s32.totalorder %s18, 1
      %p155 = por %p153, %p154
      %p156 = scmp.ne.s32.totalorder %s148, %s151
      %p157 = scmp.eq.s32.totalorder %s18, 0
      %p158 = por %p156, %p157
      %p159 = scmp.ne.s32.totalorder %s148, %s151
      %p160 = scmp.eq.s32.totalorder %s23, 1
      %p161 = por %p159, %p160
      %p162 = scmp.ne.s32.totalorder %s151, %s152
      %p163 = scmp.eq.s32.totalorder %s23, 0
      %p164 = por %p162, %p163
      %p165 = scmp.ne.s32.totalorder %s151, %s152
      %p166 = scmp.eq.s32.totalorder %s24, 1
      %p167 = por %p165, %p166
      %p169 = scmp.ne.s32.totalorder %s152, %s168
      %p170 = scmp.eq.s32.totalorder %s24, 0
      %p171 = por %p169, %p170
      %p172 = scmp.le.s32.totalorder 1, %s18
      %p173 = scmp.lt.s32.totalorder %s18, 3
      %p174 = pnand %p172, %p173
      %p175 = pneg %p174
      // Predicated region
      $region9: #{tpu_custom_call.1} parent=5 // pred_check
        _
      $region10: #{tpu_custom_call.1} parent=5 // pred_check_branch
        %177 = sbr.rel (%p174) target = $region12
      $region11: #{tpu_custom_call.1} parent=5 // pred_region
        %s178 = ssub.s32 %s18, 1
        // Predicated region
        $region13: #{tpu_custom_call.1} parent=11 // pred_check
          %p179 = pneg %p84
        $region14: #{tpu_custom_call.1} parent=11 // pred_check_branch
          %181 = sbr.rel (%p179) target = $region16
        $region15: #{tpu_custom_call.1} parent=11 // pred_region
          %s182 = smul.u32 2, %s27
          %s184 = ssub.s32 256, 256
          %185 = vsyncadd [#allocation6], %s184
          %s186 = smul.addr %s182, 128
          %s187 = scalar_lea.hbm %s1, %s186
          %s188 = sshll.u32 [#allocation5], 4
          %s189 = int_to_ptr.vmem [resolvable:$true] %s188
          %194 = dma.hbm_to_vmem [thread:$0]  %s187, 256, %s189, [#allocation6], 128, 128, 8
        $region16: #{tpu_custom_call.1} parent=11 // pred_fallthru
          _
        // Predicated region
        $region17: #{tpu_custom_call.1} parent=11 // pred_check
          %p195 = pneg %p110
        $region18: #{tpu_custom_call.1} parent=11 // pred_check_branch
          %197 = sbr.rel (%p195) target = $region20
        $region19: #{tpu_custom_call.1} parent=11 // pred_region
          %s198 = smul.u32 2, %s27
          %s200 = ssub.s32 256, 256
          %201 = vsyncadd [#allocation6], %s200
          %s202 = smul.addr %s198, 128
          %s203 = scalar_lea.hbm %s2, %s202
          %s204 = sshll.u32 [#allocation7], 4
          %s205 = int_to_ptr.vmem [resolvable:$true] %s204
          %210 = dma.hbm_to_vmem [thread:$0]  %s203, 256, %s205, [#allocation6], 128, 128, 8
        $region20: #{tpu_custom_call.1} parent=11 // pred_fallthru
          _
        // Predicated region
        $region21: #{tpu_custom_call.1} parent=11 // pred_check
          %p211 = pneg %p136
        $region22: #{tpu_custom_call.1} parent=11 // pred_check_branch
          %213 = sbr.rel (%p211) target = $region24
        $region23: #{tpu_custom_call.1} parent=11 // pred_region
          %s214 = smul.u32 2, %s27
          %s216 = ssub.s32 256, 256
          %217 = vsyncadd [#allocation9], %s216
          %s218 = smul.addr %s214, 128
          %s219 = scalar_lea.hbm %s3, %s218
          %s220 = sshll.u32 [#allocation8], 4
          %s221 = int_to_ptr.vmem [resolvable:$true] %s220
          %226 = dma.hbm_to_vmem [thread:$0]  %s219, 256, %s221, [#allocation9], 128, 128, 8
        $region24: #{tpu_custom_call.1} parent=11 // pred_fallthru
          _
      $region12: #{tpu_custom_call.1} parent=5 // pred_fallthru
        _
      %p227 = scmp.lt.s32.totalorder %s18, 2
      // Predicated region
      $region25: #{tpu_custom_call.1} parent=5 // pred_check
        %p228 = pneg %p227
      $region26: #{tpu_custom_call.1} parent=5 // pred_check_branch
        %230 = sbr.rel (%p228) target = $region28
      $region27: #{tpu_custom_call.1} parent=5 // pred_region
        // Predicated region
        $region29: #{tpu_custom_call.1} parent=27 // pred_check
          %p231 = pneg %p52
        $region30: #{tpu_custom_call.1} parent=27 // pred_check_branch
          %233 = sbr.rel (%p231) target = $region32
        $region31: #{tpu_custom_call.1} parent=27 // pred_region
          %s234 = sand.u32 %s42, 1
          %s235 = scalar_lea.sflag [#allocation3], %s234
          %s236 = sand.u32 %s42, 1
          %s237 = smul.addr %s236, 8
          %s238 = scalar_lea.vmem [#allocation2], %s237
          %s239 = sadd.s32 %s26, %s25
          %s240 = smul.u32 2, %s239
          %s242 = ssub.s32 128, 128
          %243 = vsyncadd %s235, %s242
          %s244 = smul.addr %s240, 64
          %s245 = scalar_lea.hbm %s0, %s244
          %s246 = sshll.u32 %s238, 4
          %s247 = int_to_ptr.vmem [resolvable:$true] %s246
          %252 = dma.hbm_to_vmem [thread:$0]  %s245, 128, %s247, %s235, 64, 64, 4
        $region32: #{tpu_custom_call.1} parent=27 // pred_fallthru
          _
      $region28: #{tpu_custom_call.1} parent=5 // pred_fallthru
        _
      %p253 = scmp.le.s32.totalorder 1, %s18
      %p254 = scmp.lt.s32.totalorder %s18, 3
      %p255 = pnand %p253, %p254
      %p256 = pneg %p255
      // Predicated region
      $region33: #{tpu_custom_call.1} parent=5 // pred_check
        _
      $region34: #{tpu_custom_call.1} parent=5 // pred_check_branch
        %258 = sbr.rel (%p255) target = $region36
      $region35: #{tpu_custom_call.1} parent=5 // pred_region
        %s259 = ssub.s32 %s18, 1
        %s260 = sand.u32 %s45, 1
        %s261 = scalar_lea.sflag [#allocation3], %s260
        %s262 = sand.u32 %s45, 1
        %s263 = smul.addr %s262, 8
        %s264 = scalar_lea.vmem [#allocation2], %s263
        // Predicated region
        $region37: #{tpu_custom_call.1} parent=35 // pred_check
          %p265 = pneg %p58
        $region38: #{tpu_custom_call.1} parent=35 // pred_check_branch
          %267 = sbr.rel (%p265) target = $region40
        $region39: #{tpu_custom_call.1} parent=35 // pred_region
          %268 = dma.done %s261, 128
        $region40: #{tpu_custom_call.1} parent=35 // pred_fallthru
          _
        // Predicated region
        $region41: #{tpu_custom_call.1} parent=35 // pred_check
          %p269 = pneg %p84
        $region42: #{tpu_custom_call.1} parent=35 // pred_check_branch
          %271 = sbr.rel (%p269) target = $region44
        $region43: #{tpu_custom_call.1} parent=35 // pred_region
          %272 = dma.done [#allocation6], 256
        $region44: #{tpu_custom_call.1} parent=35 // pred_fallthru
          _
        // Predicated region
        $region45: #{tpu_custom_call.1} parent=35 // pred_check
          %p273 = pneg %p110
        $region46: #{tpu_custom_call.1} parent=35 // pred_check_branch
          %275 = sbr.rel (%p273) target = $region48
        $region47: #{tpu_custom_call.1} parent=35 // pred_region
          %276 = dma.done [#allocation6], 256
        $region48: #{tpu_custom_call.1} parent=35 // pred_fallthru
          _
        // Predicated region
        $region49: #{tpu_custom_call.1} parent=35 // pred_check
          %p277 = pneg %p136
        $region50: #{tpu_custom_call.1} parent=35 // pred_check_branch
          %279 = sbr.rel (%p277) target = $region52
        $region51: #{tpu_custom_call.1} parent=35 // pred_region
          %280 = dma.done [#allocation9], 256
        $region52: #{tpu_custom_call.1} parent=35 // pred_fallthru
          _
        %s281 = sand.u32 %s45, 1
        %s282 = scalar_lea.sflag [#allocation3], %s281
        %s283 = sand.u32 %s45, 1
        %s284 = smul.addr %s283, 8
        %s285 = scalar_lea.vmem [#allocation2], %s284
        %p286 = pneg %p58
        %p287 = pneg %p55
        %p288 = pneg %p84
        %p289 = pneg %p81
        %p290 = pneg %p110
        %p291 = pneg %p107
        %p292 = pneg %p136
        %p293 = pneg %p133
        %p294 = pneg %p164
        %p295 = pneg %p161
        %s296 = sand.u32 %s151, 1
        %s297 = scalar_lea.sflag [#allocation4], %s296
        %s298 = sand.u32 %s151, 1
        %s299 = smul.addr %s298, 8
        %s300 = scalar_lea.vmem [#allocation10], %s299
        %s301 = sadd.s32 %s28, %s27
        %s302 = smul.u32 2, %s301
        %s303 = smul.u32 2, %s27
        %s304 = smul.u32 2, %s27
        %s305 = smul.u32 2, %s27
        %s306 = sadd.s32 %s28, %s27
        %s307 = smul.u32 2, %s306
        %v308 = vld [vmem:[%s264] sm:$0xf]
        %v309 = vld [vmem:[%s264 + $0x4] sm:$0xf]
        %v310 = vunpack.c.l.bf16 %v308
        %v311 = vunpack.c.l.bf16 %v309
        %312 = vrot.lane.b32.xlu0 %v310, 112
        %v313 = vpop.permute.xlu0 %312
        %314 = vrot.lane.b32.xlu0 %v311, 112
        %v315 = vpop.permute.xlu0 %314
        %316 = vrot.lane.b32.xlu0 %v310, 16
        %v317 = vpop.permute.xlu0 %316
        %318 = vrot.lane.b32.xlu0 %v311, 16
        %v319 = vpop.permute.xlu0 %318
        %v320 = vld [vmem:[#allocation5] sm:$0xff]
        %v321 = vld [vmem:[#allocation5 + $0x8] sm:$0xff]
        %v322 = vmul.f32 %v310, %v320
        %v323 = vmul.f32 %v311, %v321
        %v324 = vld [vmem:[#allocation7] sm:$0xff]
        %v325 = vld [vmem:[#allocation7 + $0x8] sm:$0xff]
        %v326 = vmul.f32 %v313, %v324
        %v327 = vmul.f32 %v315, %v325
        %v328 = vadd.f32 %v322, %v326
        %v329 = vadd.f32 %v323, %v327
        %v330 = vld [vmem:[#allocation8] sm:$0xff]
        %v331 = vld [vmem:[#allocation8 + $0x8] sm:$0xff]
        %v332 = vmul.f32 %v317, %v330
        %v333 = vmul.f32 %v319, %v331
        %v334 = vadd.f32 %v328, %v332
        %v335 = vadd.f32 %v329, %v333
        %v336 = vpack.c.bf16 %v335, %v334
        %v338 = vunpack.c.l.b16 %v336
        %v339 = vunpack.c.h.b16 %v336
        %v340 = vpack.c.b16 %v338, %v338
        %v341 = vpack.c.b16 %v339, %v339
        %344 = vst [vmem:[%s300] sm:$0xf] %v340
        %345 = vst [vmem:[%s300 + $0x4] sm:$0xf] %v341
        %s346 = sand.u32 %s151, 1
        %s347 = scalar_lea.sflag [#allocation4], %s346
        %s348 = sand.u32 %s151, 1
        %s349 = smul.addr %s348, 8
        %s350 = scalar_lea.vmem [#allocation10], %s349
        // Predicated region
        $region53: #{tpu_custom_call.1} parent=35 // pred_check
          %p351 = pneg %p161
        $region54: #{tpu_custom_call.1} parent=35 // pred_check_branch
          %353 = sbr.rel (%p351) target = $region56
        $region55: #{tpu_custom_call.1} parent=35 // pred_region
          %s354 = sadd.s32 %s28, %s27
          %s355 = smul.u32 2, %s354
          %s357 = ssub.s32 128, 128
          %358 = vsyncadd %s347, %s357
          %s359 = smul.addr %s355, 64
          %s360 = scalar_lea.hbm %s4, %s359
          %s361 = sshll.u32 %s350, 4
          %s362 = int_to_ptr.vmem [resolvable:$true] %s361
          %367 = dma.vmem_to_hbm [thread:$0]  %s362, 128, %s360, %s347, 64, 64, 4
        $region56: #{tpu_custom_call.1} parent=35 // pred_fallthru
          _
      $region36: #{tpu_custom_call.1} parent=5 // pred_fallthru
        _
      %p368 = scmp.le.s32.totalorder 2, %s18
      // Predicated region
      $region57: #{tpu_custom_call.1} parent=5 // pred_check
        %p369 = pneg %p368
      $region58: #{tpu_custom_call.1} parent=5 // pred_check_branch
        %371 = sbr.rel (%p369) target = $region60
      $region59: #{tpu_custom_call.1} parent=5 // pred_region
        %s372 = ssub.s32 %s18, 2
        // Predicated region
        $region61: #{tpu_custom_call.1} parent=59 // pred_check
          %p373 = pneg %p167
        $region62: #{tpu_custom_call.1} parent=59 // pred_check_branch
          %375 = sbr.rel (%p373) target = $region64
        $region63: #{tpu_custom_call.1} parent=59 // pred_region
          %s376 = sand.u32 %s152, 1
          %s377 = scalar_lea.sflag [#allocation4], %s376
          %s378 = sand.u32 %s152, 1
          %s379 = smul.addr %s378, 8
          %s380 = scalar_lea.vmem [#allocation10], %s379
          %381 = dma.done %s377, 128
        $region64: #{tpu_custom_call.1} parent=59 // pred_fallthru
          _
      $region60: #{tpu_custom_call.1} parent=5 // pred_fallthru
        _
    $region6: #{tpu_custom_call.1} parent=1 // loop_footer
      %s22 = sadd.s32 1, %s18
    $region7: #{tpu_custom_call.1} parent=1 // loop_footer_branch
      %17 = sbr.rel target = $region3
    $region8: #{tpu_custom_call.1} parent=1 // loop_exit
      _
    %382 = vsyncpa [#allocation3], 1
    %s383 = scalar_lea.sflag [#allocation3], 1
    %384 = vsyncpa %s383, 1
    %385 = vsyncpa [#allocation6], 1
    %386 = vsyncpa [#allocation9], 1
    %387 = vsyncpa [#allocation4], 1
    %s388 = scalar_lea.sflag [#allocation4], 1
    %389 = vsyncpa %s388, 1

</llo_original>
